<compile_context>
chip_gen: v6e
topology: v6e:2x2x1
jax: 0.10.0
libtpu: 0.0.40
codegen_flags: <defaults>
</compile_context>

<pallas_src>
import jax
import jax.numpy as jnp
from jax.experimental import pallas as pl
from jax.experimental.pallas import tpu as pltpu


def _elu(y):
    # ELU(alpha=1). exp(min(y, 0)) avoids inf in the unselected branch.
    return jnp.where(y > 0.0, y, jnp.exp(jnp.minimum(y, 0.0)) - 1.0)


# ----------------------------------------------------------------------------
# One fused kernel: GAT1 -> Linear+BN(folded)+ELU -> GAT2 -> Linear+BN+ELU
# ----------------------------------------------------------------------------
def _fused_forward_kernel(x_ref, adj_ref,
                          w1_ref, ws1_ref, wd1_ref, wl1_ref, bl1_ref,
                          w2_ref, ws2_ref, wd2_ref, wl2_ref, bl2_ref,
                          o_ref):
    # int8 adjacency -> boolean edge mask in VMEM; computed once, reused by both
    # GAT layers.  (int8 -> f32 extend keeps the select on a plain f32 layout.)
    adj_ok = adj_ref[...].astype(jnp.float32) > 0.0                    # (N, N) bool

    def gat(h_in_bf, w_ref_, ws_ref_, wd_ref_):
        # Node projection on the MXU (bf16 operands, f32 accumulation).
        h = jnp.dot(h_in_bf, w_ref_[...],
                    preferred_element_type=jnp.float32)                # (N, F) f32
        h_bf = h.astype(jnp.bfloat16)       # cast once; reused by the attn@h dot.
        # Attention logits from the *input* features: a_src/a_dst already folded
        # into W in the wrapper, so no (N,F) cross-lane reduce and no
        # (N,1)->(1,N) relayout is needed.
        e_src = jnp.dot(h_in_bf, ws_ref_[...],
                        preferred_element_type=jnp.float32)            # (N, 1)
        e_dst = jax.lax.dot_general(wd_ref_[...], h_in_bf,
                                    (((1,), (1,)), ((), ())),
                                    preferred_element_type=jnp.float32)  # (1, N)
        e = e_src + e_dst                                              # (N, N)
        e = jnp.maximum(e, 0.2 * e)                                    # LeakyReLU(0.2)
        e = jnp.where(adj_ok, e, -1e9)                                 # mask non-edges
        e = e - jnp.max(e, axis=-1, keepdims=True)                     # stable softmax
        p = jnp.exp(e)
        inv = pl.reciprocal(jnp.sum(p, axis=-1, keepdims=True), approx=True)
        attn = (p * inv).astype(jnp.bfloat16)                          # (N, N) bf16
        out = jnp.dot(attn, h_bf, preferred_element_type=jnp.float32)  # (N, F)
        return _elu(out)                                               # concat=True -> ELU

    def lin(h_bf, w_ref_, b_ref_):
        # BatchNorm1d(eval) folded into W/b by the wrapper; Dropout(0.1) is identity.
        y = jnp.dot(h_bf, w_ref_[...],
                    preferred_element_type=jnp.float32) + b_ref_[...]
        return _elu(y)

    x_bf = x_ref[...]                                                  # (N, F_in) bf16
    x1 = gat(x_bf, w1_ref, ws1_ref, wd1_ref)                           # (N, H0) f32
    x2 = lin(x1.astype(jnp.bfloat16), wl1_ref, bl1_ref)                # (N, H1) f32
    x3 = gat(x2.astype(jnp.bfloat16), w2_ref, ws2_ref, wd2_ref)        # (N, H2) f32
    # lin2 weights were zero-padded to 128 output lanes -> unmasked, lane-dense store.
    o_ref[...] = lin(x3.astype(jnp.bfloat16), wl2_ref, bl2_ref)        # (N, 128) f32


# ----------------------------------------------------------------------------
# Wrapper: fold BN into Linear, fold a_src/a_dst into W, int8 adjacency,
# lane-dense (padded) output, one pallas_call.
# ----------------------------------------------------------------------------
def _fold_bn(w, b, gamma, beta, mean, var, eps=1e-5):
    scale = gamma * jax.lax.rsqrt(var + eps)                 # (1, F_out)
    w_f = (w * scale).astype(jnp.bfloat16)                   # W' = W * scale (bf16 for MXU)
    b_f = ((b - mean) * scale + beta).astype(jnp.float32)    # b' stays f32
    return w_f, b_f


def _fold_attn(attr):
    # e_src_i = h_i . a_src = x_i . (W a_src^T);  e_dst_j = x_j . (W a_dst^T).
    w = attr["W"]
    w_src = (w @ attr["a_src"].T).astype(jnp.bfloat16)       # (F_in, 1)
    w_dst = (attr["a_dst"] @ w.T).astype(jnp.bfloat16)       # (1, F_in)
    return w.astype(jnp.bfloat16), w_src, w_dst


@jax.jit
def graph_attention_net(params, x, adj):
    p = params
    n = x.shape[0]
    f_out = p["lin2"]["W"].shape[1]
    f_pad = ((f_out + 127) // 128) * 128                     # lane-dense output width

    adj_i8 = (adj > 0).astype(jnp.int8)                      # (N, N) int8 edge mask

    w1, ws1, wd1 = _fold_attn(p["attr1"])
    w2, ws2, wd2 = _fold_attn(p["attr2"])
    wl1, bl1 = _fold_bn(p["lin1"]["W"], p["lin1"]["b"], p["lin1"]["gamma"],
                        p["lin1"]["beta"], p["lin1"]["mean"], p["lin1"]["var"])
    wl2, bl2 = _fold_bn(p["lin2"]["W"], p["lin2"]["b"], p["lin2"]["gamma"],
                        p["lin2"]["beta"], p["lin2"]["mean"], p["lin2"]["var"])
    # Zero-pad lin2 output columns to a multiple of 128 (padded cols give ELU(0)=0).
    wl2p = jnp.pad(wl2, ((0, 0), (0, f_pad - f_out)))
    bl2p = jnp.pad(bl2, ((0, 0), (0, f_pad - f_out)))

    args = (x.astype(jnp.bfloat16), adj_i8,
            w1, ws1, wd1, wl1, bl1,
            w2, ws2, wd2, wl2p, bl2p)

    vmem = pl.BlockSpec(memory_space=pltpu.MemorySpace.VMEM)
    out = pl.pallas_call(
        _fused_forward_kernel,
        in_specs=[vmem] * len(args),
        out_specs=vmem,
        out_shape=jax.ShapeDtypeStruct((n, f_pad), jnp.float32),
    )(*args)
    return out[:, :f_out]


# ----------------------------------------------------------------------------
# Pure-JAX f32 reference (matches the PyTorch module in eval mode)
# ----------------------------------------------------------------------------
def _reference_forward(params, x, adj, eps=1e-5):
    mask = adj > 0

    def gat(h_in, attr):
        h = h_in @ attr["W"]
        e = (h @ attr["a_src"].T) + (h @ attr["a_dst"].T).T
        e = jnp.where(e > 0, e, 0.2 * e)
        e = jnp.where(mask, e, -1e9)
        attn = jax.nn.softmax(e, axis=-1)
        return jax.nn.elu(attn @ h)

    def lin(h_in, lp):
        y = h_in @ lp["W"] + lp["b"]
        y = (y - lp["mean"]) * lp["gamma"] / jnp.sqrt(lp["var"] + eps) + lp["beta"]
        return jax.nn.elu(y)

    x1 = gat(x, params["attr1"])
    x2 = lin(x1, params["lin1"])
    x3 = gat(x2, params["attr2"])
    return lin(x3, params["lin2"])


# ----------------------------------------------------------------------------
# Parameter construction (deterministic, synthetic)
# ----------------------------------------------------------------------------
def init_params(key, in_features, out_features, hidden):
    ks = jax.random.split(key, 12)
    scale = 0.1

    def rnd(k, shape):
        return scale * jax.random.normal(k, shape, dtype=jnp.float32)

    return {
        # GAT layer 1: in_features -> hidden[0]
        "attr1": {
            "W": rnd(ks[0], (in_features, hidden[0])),
            "a_src": rnd(ks[1], (1, hidden[0])),
            "a_dst": rnd(ks[2], (1, hidden[0])),
        },
        # lin1: hidden[0] -> hidden[1], BN(hidden[1])
        "lin1": {
            "W": rnd(ks[3], (hidden[0], hidden[1])),
            "b": rnd(ks[4], (1, hidden[1])),
            "gamma": 1.0 + rnd(ks[5], (1, hidden[1])),
            "beta": rnd(ks[6], (1, hidden[1])),
            "mean": jnp.zeros((1, hidden[1]), jnp.float32),
            "var": jnp.ones((1, hidden[1]), jnp.float32),
        },
        # GAT layer 2: hidden[1] -> hidden[2]
        "attr2": {
            "W": rnd(ks[7], (hidden[1], hidden[2])),
            "a_src": rnd(ks[8], (1, hidden[2])),
            "a_dst": rnd(ks[9], (1, hidden[2])),
        },
        # lin2: hidden[2] -> out_features, BN(out_features)
        "lin2": {
            "W": rnd(ks[10], (hidden[2], out_features)),
            "b": rnd(ks[11], (1, out_features)),
            "gamma": jnp.ones((1, out_features), jnp.float32),
            "beta": jnp.zeros((1, out_features), jnp.float32),
            "mean": jnp.zeros((1, out_features), jnp.float32),
            "var": jnp.ones((1, out_features), jnp.float32),
        },
    }


if __name__ == "__main__":
    # Small, deterministic example.
    N = 16                 # number of graph nodes
    IN_FEATURES = 8
    OUT_FEATURES = 4
    HIDDEN = [128, 64, 32]

    key = jax.random.PRNGKey(0)
    k_x, k_adj, k_p = jax.random.split(key, 3)

    x = jax.random.normal(k_x, (N, IN_FEATURES), dtype=jnp.float32)

    # Random symmetric adjacency with self-loops (dense, {0,1}).
    a = (jax.random.uniform(k_adj, (N, N)) > 0.6).astype(jnp.float32)
    adj = jnp.clip(a + a.T + jnp.eye(N, dtype=jnp.float32), 0.0, 1.0)

    params = init_params(k_p, IN_FEATURES, OUT_FEATURES, HIDDEN)

    out = graph_attention_net(params, x, adj)
    out = jax.block_until_ready(out)

    assert out.shape == (N, OUT_FEATURES), out.shape
    assert bool(jnp.all(jnp.isfinite(out)))

    # Tolerance covers bf16 MXU operands, folded BN in bf16 weights, and the
    # approx reciprocal in the softmax denominator (~1e-2 relative expected).
    ref = _reference_forward(params, x, adj)
    assert bool(jnp.allclose(out, ref, atol=5e-2, rtol=5e-2)), (
        "max abs err = %f" % float(jnp.max(jnp.abs(out - ref))))

    print("KERNEL_OK")
</pallas_src>

<mosaic_0001>
module attributes {stable_mosaic.version = 11 : i64} {
  func.func @_fused_forward_kernel(%arg0: memref<16x8xbf16, #tpu.memory_space<vmem>>, %arg1: memref<16x16xi8, #tpu.memory_space<vmem>>, %arg2: memref<8x128xbf16, #tpu.memory_space<vmem>>, %arg3: memref<8x1xbf16, #tpu.memory_space<vmem>>, %arg4: memref<1x8xbf16, #tpu.memory_space<vmem>>, %arg5: memref<128x64xbf16, #tpu.memory_space<vmem>>, %arg6: memref<1x64xf32, #tpu.memory_space<vmem>>, %arg7: memref<64x32xbf16, #tpu.memory_space<vmem>>, %arg8: memref<64x1xbf16, #tpu.memory_space<vmem>>, %arg9: memref<1x64xbf16, #tpu.memory_space<vmem>>, %arg10: memref<32x128xbf16, #tpu.memory_space<vmem>>, %arg11: memref<1x128xf32, #tpu.memory_space<vmem>>, %arg12: memref<16x128xf32, #tpu.memory_space<vmem>>) attributes {dimension_semantics = [], scalar_prefetch = 0 : i64, scratch_operands = 0 : i64, tpu.core_type = #tpu.core_type<tc>} {
    %c0 = arith.constant 0 : index
    %c0_0 = arith.constant 0 : index
    %0 = vector.load %arg1[%c0, %c0_0] : memref<16x16xi8, #tpu.memory_space<vmem>>, vector<16x16xi8>
    %1 = arith.sitofp %0 : vector<16x16xi8> to vector<16x16xf32>
    %cst = arith.constant 0.000000e+00 : f32
    %2 = vector.broadcast %cst : f32 to vector<16x16xf32>
    %3 = arith.cmpf ogt, %1, %2 : vector<16x16xf32>
    %c0_1 = arith.constant 0 : index
    %c0_2 = arith.constant 0 : index
    %4 = vector.load %arg0[%c0_1, %c0_2] : memref<16x8xbf16, #tpu.memory_space<vmem>>, vector<16x8xbf16>
    %c0_3 = arith.constant 0 : index
    %c0_4 = arith.constant 0 : index
    %5 = vector.load %arg2[%c0_3, %c0_4] : memref<8x128xbf16, #tpu.memory_space<vmem>>, vector<8x128xbf16>
    %cst_5 = arith.constant dense<0.000000e+00> : vector<16x128xf32>
    %6 = tpu.matmul %4, %5, %cst_5 {dimension_numbers = #tpu.dot_dimension_numbers<[1], [0], [0], [1], [0, 0, 1, 1], [], []>} : vector<16x8xbf16>, vector<8x128xbf16>, vector<16x128xf32> -> vector<16x128xf32>
    %7 = arith.truncf %6 : vector<16x128xf32> to vector<16x128xbf16>
    %c0_6 = arith.constant 0 : index
    %c0_7 = arith.constant 0 : index
    %8 = vector.load %arg3[%c0_6, %c0_7] : memref<8x1xbf16, #tpu.memory_space<vmem>>, vector<8x1xbf16>
    %cst_8 = arith.constant dense<0.000000e+00> : vector<16x1xf32>
    %9 = tpu.matmul %4, %8, %cst_8 {dimension_numbers = #tpu.dot_dimension_numbers<[1], [0], [0], [1], [0, 0, 1, 1], [], []>} : vector<16x8xbf16>, vector<8x1xbf16>, vector<16x1xf32> -> vector<16x1xf32>
    %c0_9 = arith.constant 0 : index
    %c0_10 = arith.constant 0 : index
    %10 = vector.load %arg4[%c0_9, %c0_10] : memref<1x8xbf16, #tpu.memory_space<vmem>>, vector<1x8xbf16>
    %cst_11 = arith.constant dense<0.000000e+00> : vector<1x16xf32>
    %11 = tpu.matmul %10, %4, %cst_11 {dimension_numbers = #tpu.dot_dimension_numbers<[1], [1], [0], [0], [0, 0, 1, 0], [], []>} : vector<1x8xbf16>, vector<16x8xbf16>, vector<1x16xf32> -> vector<1x16xf32>
    %12 = vector.broadcast %9 : vector<16x1xf32> to vector<16x16xf32>
    %13 = vector.broadcast %11 : vector<1x16xf32> to vector<16x16xf32>
    %14 = arith.addf %12, %13 : vector<16x16xf32>
    %cst_12 = arith.constant 2.000000e-01 : f32
    %15 = vector.broadcast %cst_12 : f32 to vector<16x16xf32>
    %16 = arith.mulf %15, %14 : vector<16x16xf32>
    %17 = arith.maximumf %14, %16 : vector<16x16xf32>
    %cst_13 = arith.constant -1.000000e+09 : f32
    %18 = vector.broadcast %cst_13 : f32 to vector<16x16xf32>
    %19 = arith.select %3, %17, %18 : vector<16x16xi1>, vector<16x16xf32>
    %cst_14 = arith.constant dense<0xFF800000> : vector<16xf32>
    %20 = vector.multi_reduction <maximumf>, %19, %cst_14 [1] : vector<16x16xf32> to vector<16xf32>
    %21 = vector.shape_cast %20 : vector<16xf32> to vector<16x1xf32>
    %22 = vector.broadcast %21 : vector<16x1xf32> to vector<16x16xf32>
    %23 = arith.subf %19, %22 : vector<16x16xf32>
    %24 = math.exp %23 : vector<16x16xf32>
    %cst_15 = arith.constant dense<0.000000e+00> : vector<16xf32>
    %25 = vector.multi_reduction <add>, %24, %cst_15 [1] : vector<16x16xf32> to vector<16xf32>
    %26 = vector.shape_cast %25 : vector<16xf32> to vector<16x1xf32>
    %27 = tpu.reciprocal %26 {approx = true} : vector<16x1xf32> -> vector<16x1xf32>
    %28 = vector.broadcast %27 : vector<16x1xf32> to vector<16x16xf32>
    %29 = arith.mulf %24, %28 : vector<16x16xf32>
    %30 = arith.truncf %29 : vector<16x16xf32> to vector<16x16xbf16>
    %cst_16 = arith.constant dense<0.000000e+00> : vector<16x128xf32>
    %31 = tpu.matmul %30, %7, %cst_16 {dimension_numbers = #tpu.dot_dimension_numbers<[1], [0], [0], [1], [0, 0, 1, 1], [], []>} : vector<16x16xbf16>, vector<16x128xbf16>, vector<16x128xf32> -> vector<16x128xf32>
    %cst_17 = arith.constant 0.000000e+00 : f32
    %32 = vector.broadcast %cst_17 : f32 to vector<16x128xf32>
    %33 = arith.cmpf ogt, %31, %32 : vector<16x128xf32>
    %cst_18 = arith.constant 0.000000e+00 : f32
    %34 = vector.broadcast %cst_18 : f32 to vector<16x128xf32>
    %35 = arith.minimumf %31, %34 : vector<16x128xf32>
    %36 = math.exp %35 : vector<16x128xf32>
    %cst_19 = arith.constant 1.000000e+00 : f32
    %37 = vector.broadcast %cst_19 : f32 to vector<16x128xf32>
    %38 = arith.subf %36, %37 : vector<16x128xf32>
    %39 = arith.select %33, %31, %38 : vector<16x128xi1>, vector<16x128xf32>
    %40 = arith.truncf %39 : vector<16x128xf32> to vector<16x128xbf16>
    %c0_20 = arith.constant 0 : index
    %c0_21 = arith.constant 0 : index
    %41 = vector.load %arg5[%c0_20, %c0_21] : memref<128x64xbf16, #tpu.memory_space<vmem>>, vector<128x64xbf16>
    %cst_22 = arith.constant dense<0.000000e+00> : vector<16x64xf32>
    %42 = tpu.matmul %40, %41, %cst_22 {dimension_numbers = #tpu.dot_dimension_numbers<[1], [0], [0], [1], [0, 0, 1, 1], [], []>} : vector<16x128xbf16>, vector<128x64xbf16>, vector<16x64xf32> -> vector<16x64xf32>
    %c0_23 = arith.constant 0 : index
    %c0_24 = arith.constant 0 : index
    %43 = vector.load %arg6[%c0_23, %c0_24] : memref<1x64xf32, #tpu.memory_space<vmem>>, vector<1x64xf32>
    %44 = vector.broadcast %43 : vector<1x64xf32> to vector<16x64xf32>
    %45 = arith.addf %42, %44 : vector<16x64xf32>
    %cst_25 = arith.constant 0.000000e+00 : f32
    %46 = vector.broadcast %cst_25 : f32 to vector<16x64xf32>
    %47 = arith.cmpf ogt, %45, %46 : vector<16x64xf32>
    %cst_26 = arith.constant 0.000000e+00 : f32
    %48 = vector.broadcast %cst_26 : f32 to vector<16x64xf32>
    %49 = arith.minimumf %45, %48 : vector<16x64xf32>
    %50 = math.exp %49 : vector<16x64xf32>
    %cst_27 = arith.constant 1.000000e+00 : f32
    %51 = vector.broadcast %cst_27 : f32 to vector<16x64xf32>
    %52 = arith.subf %50, %51 : vector<16x64xf32>
    %53 = arith.select %47, %45, %52 : vector<16x64xi1>, vector<16x64xf32>
    %54 = arith.truncf %53 : vector<16x64xf32> to vector<16x64xbf16>
    %c0_28 = arith.constant 0 : index
    %c0_29 = arith.constant 0 : index
    %55 = vector.load %arg7[%c0_28, %c0_29] : memref<64x32xbf16, #tpu.memory_space<vmem>>, vector<64x32xbf16>
    %cst_30 = arith.constant dense<0.000000e+00> : vector<16x32xf32>
    %56 = tpu.matmul %54, %55, %cst_30 {dimension_numbers = #tpu.dot_dimension_numbers<[1], [0], [0], [1], [0, 0, 1, 1], [], []>} : vector<16x64xbf16>, vector<64x32xbf16>, vector<16x32xf32> -> vector<16x32xf32>
    %57 = arith.truncf %56 : vector<16x32xf32> to vector<16x32xbf16>
    %c0_31 = arith.constant 0 : index
    %c0_32 = arith.constant 0 : index
    %58 = vector.load %arg8[%c0_31, %c0_32] : memref<64x1xbf16, #tpu.memory_space<vmem>>, vector<64x1xbf16>
    %cst_33 = arith.constant dense<0.000000e+00> : vector<16x1xf32>
    %59 = tpu.matmul %54, %58, %cst_33 {dimension_numbers = #tpu.dot_dimension_numbers<[1], [0], [0], [1], [0, 0, 1, 1], [], []>} : vector<16x64xbf16>, vector<64x1xbf16>, vector<16x1xf32> -> vector<16x1xf32>
    %c0_34 = arith.constant 0 : index
    %c0_35 = arith.constant 0 : index
    %60 = vector.load %arg9[%c0_34, %c0_35] : memref<1x64xbf16, #tpu.memory_space<vmem>>, vector<1x64xbf16>
    %cst_36 = arith.constant dense<0.000000e+00> : vector<1x16xf32>
    %61 = tpu.matmul %60, %54, %cst_36 {dimension_numbers = #tpu.dot_dimension_numbers<[1], [1], [0], [0], [0, 0, 1, 0], [], []>} : vector<1x64xbf16>, vector<16x64xbf16>, vector<1x16xf32> -> vector<1x16xf32>
    %62 = vector.broadcast %59 : vector<16x1xf32> to vector<16x16xf32>
    %63 = vector.broadcast %61 : vector<1x16xf32> to vector<16x16xf32>
    %64 = arith.addf %62, %63 : vector<16x16xf32>
    %cst_37 = arith.constant 2.000000e-01 : f32
    %65 = vector.broadcast %cst_37 : f32 to vector<16x16xf32>
    %66 = arith.mulf %65, %64 : vector<16x16xf32>
    %67 = arith.maximumf %64, %66 : vector<16x16xf32>
    %cst_38 = arith.constant -1.000000e+09 : f32
    %68 = vector.broadcast %cst_38 : f32 to vector<16x16xf32>
    %69 = arith.select %3, %67, %68 : vector<16x16xi1>, vector<16x16xf32>
    %cst_39 = arith.constant dense<0xFF800000> : vector<16xf32>
    %70 = vector.multi_reduction <maximumf>, %69, %cst_39 [1] : vector<16x16xf32> to vector<16xf32>
    %71 = vector.shape_cast %70 : vector<16xf32> to vector<16x1xf32>
    %72 = vector.broadcast %71 : vector<16x1xf32> to vector<16x16xf32>
    %73 = arith.subf %69, %72 : vector<16x16xf32>
    %74 = math.exp %73 : vector<16x16xf32>
    %cst_40 = arith.constant dense<0.000000e+00> : vector<16xf32>
    %75 = vector.multi_reduction <add>, %74, %cst_40 [1] : vector<16x16xf32> to vector<16xf32>
    %76 = vector.shape_cast %75 : vector<16xf32> to vector<16x1xf32>
    %77 = tpu.reciprocal %76 {approx = true} : vector<16x1xf32> -> vector<16x1xf32>
    %78 = vector.broadcast %77 : vector<16x1xf32> to vector<16x16xf32>
    %79 = arith.mulf %74, %78 : vector<16x16xf32>
    %80 = arith.truncf %79 : vector<16x16xf32> to vector<16x16xbf16>
    %cst_41 = arith.constant dense<0.000000e+00> : vector<16x32xf32>
    %81 = tpu.matmul %80, %57, %cst_41 {dimension_numbers = #tpu.dot_dimension_numbers<[1], [0], [0], [1], [0, 0, 1, 1], [], []>} : vector<16x16xbf16>, vector<16x32xbf16>, vector<16x32xf32> -> vector<16x32xf32>
    %cst_42 = arith.constant 0.000000e+00 : f32
    %82 = vector.broadcast %cst_42 : f32 to vector<16x32xf32>
    %83 = arith.cmpf ogt, %81, %82 : vector<16x32xf32>
    %cst_43 = arith.constant 0.000000e+00 : f32
    %84 = vector.broadcast %cst_43 : f32 to vector<16x32xf32>
    %85 = arith.minimumf %81, %84 : vector<16x32xf32>
    %86 = math.exp %85 : vector<16x32xf32>
    %cst_44 = arith.constant 1.000000e+00 : f32
    %87 = vector.broadcast %cst_44 : f32 to vector<16x32xf32>
    %88 = arith.subf %86, %87 : vector<16x32xf32>
    %89 = arith.select %83, %81, %88 : vector<16x32xi1>, vector<16x32xf32>
    %90 = arith.truncf %89 : vector<16x32xf32> to vector<16x32xbf16>
    %c0_45 = arith.constant 0 : index
    %c0_46 = arith.constant 0 : index
    %91 = vector.load %arg10[%c0_45, %c0_46] : memref<32x128xbf16, #tpu.memory_space<vmem>>, vector<32x128xbf16>
    %cst_47 = arith.constant dense<0.000000e+00> : vector<16x128xf32>
    %92 = tpu.matmul %90, %91, %cst_47 {dimension_numbers = #tpu.dot_dimension_numbers<[1], [0], [0], [1], [0, 0, 1, 1], [], []>} : vector<16x32xbf16>, vector<32x128xbf16>, vector<16x128xf32> -> vector<16x128xf32>
    %c0_48 = arith.constant 0 : index
    %c0_49 = arith.constant 0 : index
    %93 = vector.load %arg11[%c0_48, %c0_49] : memref<1x128xf32, #tpu.memory_space<vmem>>, vector<1x128xf32>
    %94 = vector.broadcast %93 : vector<1x128xf32> to vector<16x128xf32>
    %95 = arith.addf %92, %94 : vector<16x128xf32>
    %cst_50 = arith.constant 0.000000e+00 : f32
    %96 = vector.broadcast %cst_50 : f32 to vector<16x128xf32>
    %97 = arith.cmpf ogt, %95, %96 : vector<16x128xf32>
    %cst_51 = arith.constant 0.000000e+00 : f32
    %98 = vector.broadcast %cst_51 : f32 to vector<16x128xf32>
    %99 = arith.minimumf %95, %98 : vector<16x128xf32>
    %100 = math.exp %99 : vector<16x128xf32>
    %cst_52 = arith.constant 1.000000e+00 : f32
    %101 = vector.broadcast %cst_52 : f32 to vector<16x128xf32>
    %102 = arith.subf %100, %101 : vector<16x128xf32>
    %103 = arith.select %97, %95, %102 : vector<16x128xi1>, vector<16x128xf32>
    %c0_53 = arith.constant 0 : index
    %c0_54 = arith.constant 0 : index
    %104 = vector.load %arg12[%c0_53, %c0_54] : memref<16x128xf32, #tpu.memory_space<vmem>>, vector<16x128xf32>
    tpu.vector_store %arg12[%c0_53, %c0_54], %103 {strides = array<i32>} : memref<16x128xf32, #tpu.memory_space<vmem>>, vector<16x128xf32>,
    return
  }
}

</mosaic_0001>

<llo_original>
// kernel: graph_attention_net.1
$region0: #{graph_attention_net.1}
  #allocation0 [shape = 'u32[]', space=smem, size = 0x4, offset = 0x4, fixed_abs, tag = 'smem constant byte address 0x4 - core index']
  #allocation1 [shape = 'u32[144,128]{1,0:T(1,128)}', space=vmem, size = 0x12000, scoped, tag = 'internal scratch']
  %s0 = inlined_call_operand.vmem [shape: bf16[16,8], index: 0, kind: input, shape index: {}]
  %s1 = inlined_call_operand.vmem [shape: s8[16,16], index: 1, kind: input, shape index: {}]
  %s2 = inlined_call_operand.vmem [shape: bf16[8,128], index: 2, kind: input, shape index: {}]
  %s3 = inlined_call_operand.vmem [shape: bf16[8,1], index: 3, kind: input, shape index: {}]
  %s4 = inlined_call_operand.vmem [shape: bf16[1,8], index: 4, kind: input, shape index: {}]
  %s5 = inlined_call_operand.vmem [shape: bf16[128,64], index: 5, kind: input, shape index: {}]
  %s6 = inlined_call_operand.vmem [shape: f32[1,64], index: 6, kind: input, shape index: {}]
  %s7 = inlined_call_operand.vmem [shape: bf16[64,32], index: 7, kind: input, shape index: {}]
  %s8 = inlined_call_operand.vmem [shape: bf16[64,1], index: 8, kind: input, shape index: {}]
  %s9 = inlined_call_operand.vmem [shape: bf16[1,64], index: 9, kind: input, shape index: {}]
  %s10 = inlined_call_operand.vmem [shape: bf16[32,128], index: 10, kind: input, shape index: {}]
  %s11 = inlined_call_operand.vmem [shape: f32[1,128], index: 11, kind: input, shape index: {}]
  %s12 = inlined_call_operand.vmem [shape: f32[16,128], index: 12, kind: output, shape index: {}]
  %s13 = sld [smem:[#allocation0]]
  $region58: #{graph_attention_net.1} parent=0
    _
  %s15 = ssub.s32 1, %s13
  %s16 = scalar_select 0, %s15, %s13
  // Predicated region
  $region2: #{graph_attention_net.1} parent=0 // pred_check
    _
  $region3: #{graph_attention_net.1} parent=0 // pred_check_branch
    %18 = sbr.rel (0) target = $region5
  $region4: #{graph_attention_net.1} parent=0 // pred_region
    _
  $region5: #{graph_attention_net.1} parent=0 // pred_fallthru
    _
  // Predicated region
  $region6: #{graph_attention_net.1} parent=0 // pred_check
    _
  $region7: #{graph_attention_net.1} parent=0 // pred_check_branch
    %20 = sbr.rel (0) target = $region9
  $region8: #{graph_attention_net.1} parent=0 // pred_region
    _
  $region9: #{graph_attention_net.1} parent=0 // pred_fallthru
    _
  // Predicated region
  $region10: #{graph_attention_net.1} parent=0 // pred_check
    _
  $region11: #{graph_attention_net.1} parent=0 // pred_check_branch
    %22 = sbr.rel (0) target = $region13
  $region12: #{graph_attention_net.1} parent=0 // pred_region
    _
  $region13: #{graph_attention_net.1} parent=0 // pred_fallthru
    _
  // Predicated region
  $region14: #{graph_attention_net.1} parent=0 // pred_check
    _
  $region15: #{graph_attention_net.1} parent=0 // pred_check_branch
    %24 = sbr.rel (0) target = $region17
  $region16: #{graph_attention_net.1} parent=0 // pred_region
    _
  $region17: #{graph_attention_net.1} parent=0 // pred_fallthru
    _
  // Predicated region
  $region18: #{graph_attention_net.1} parent=0 // pred_check
    _
  $region19: #{graph_attention_net.1} parent=0 // pred_check_branch
    %26 = sbr.rel (0) target = $region21
  $region20: #{graph_attention_net.1} parent=0 // pred_region
    _
  $region21: #{graph_attention_net.1} parent=0 // pred_fallthru
    _
  // Predicated region
  $region22: #{graph_attention_net.1} parent=0 // pred_check
    _
  $region23: #{graph_attention_net.1} parent=0 // pred_check_branch
    %28 = sbr.rel (0) target = $region25
  $region24: #{graph_attention_net.1} parent=0 // pred_region
    _
  $region25: #{graph_attention_net.1} parent=0 // pred_fallthru
    _
  // Predicated region
  $region26: #{graph_attention_net.1} parent=0 // pred_check
    _
  $region27: #{graph_attention_net.1} parent=0 // pred_check_branch
    %30 = sbr.rel (0) target = $region29
  $region28: #{graph_attention_net.1} parent=0 // pred_region
    _
  $region29: #{graph_attention_net.1} parent=0 // pred_fallthru
    _
  // Predicated region
  $region30: #{graph_attention_net.1} parent=0 // pred_check
    _
  $region31: #{graph_attention_net.1} parent=0 // pred_check_branch
    %32 = sbr.rel (0) target = $region33
  $region32: #{graph_attention_net.1} parent=0 // pred_region
    _
  $region33: #{graph_attention_net.1} parent=0 // pred_fallthru
    _
  // Predicated region
  $region34: #{graph_attention_net.1} parent=0 // pred_check
    _
  $region35: #{graph_attention_net.1} parent=0 // pred_check_branch
    %34 = sbr.rel (0) target = $region37
  $region36: #{graph_attention_net.1} parent=0 // pred_region
    _
  $region37: #{graph_attention_net.1} parent=0 // pred_fallthru
    _
  // Predicated region
  $region38: #{graph_attention_net.1} parent=0 // pred_check
    _
  $region39: #{graph_attention_net.1} parent=0 // pred_check_branch
    %36 = sbr.rel (0) target = $region41
  $region40: #{graph_attention_net.1} parent=0 // pred_region
    _
  $region41: #{graph_attention_net.1} parent=0 // pred_fallthru
    _
  // Predicated region
  $region42: #{graph_attention_net.1} parent=0 // pred_check
    _
  $region43: #{graph_attention_net.1} parent=0 // pred_check_branch
    %38 = sbr.rel (0) target = $region45
  $region44: #{graph_attention_net.1} parent=0 // pred_region
    _
  $region45: #{graph_attention_net.1} parent=0 // pred_fallthru
    _
  // Predicated region
  $region46: #{graph_attention_net.1} parent=0 // pred_check
    _
  $region47: #{graph_attention_net.1} parent=0 // pred_check_branch
    %40 = sbr.rel (0) target = $region49
  $region48: #{graph_attention_net.1} parent=0 // pred_region
    _
  $region49: #{graph_attention_net.1} parent=0 // pred_fallthru
    _
  %v42 = vld [vmem:[%s1] sm:$0x3]
  %v43 = vld [vmem:[%s1 + $0x2] sm:$0x3]
  %v44 = vunpack.c.0.s8 %v42
  %v45 = vunpack.c.0.s8 %v43
  %v46 = vcvt.s32.f32 %v44
  %v47 = vcvt.s32.f32 %v45
  %vm48 = vcmp.gt.f32.partialorder %v46, 0.0
  %vm49 = vcmp.gt.f32.partialorder %v47, 0.0
  %v50 = vld [vmem:[%s0] sm:$0xf]
  %v51 = vld [vmem:[%s0 + $0x4] sm:$0xf]
  %v52 = vld [vmem:[%s2] sm:$0xf]
  %v55 = vunpack.c.l.b16 %v50
  %v56 = vunpack.c.l.b16 %v51
  %v57 = vpack.c.b16 %v56, %v55
  %vm58 = vcmask 64512
  %v60 = vsel %vm58, %v57, 0
  %vm62 = vcmask 1043456
  %v64 = vsel %vm62, %v52, 0
  %66 = vmatprep.subr.bf16.mxu0 0
  %67 = vmatpush1.bf16.msra.mxu0 0
  %68 = vmatprep.subr.bf16.mxu0 0
  %69 = vmatpush1.bf16.msra.mxu0 0
  %70 = vmatprep.subr.bf16.mxu0 0
  %71 = vmatpush1.bf16.msra.mxu0 0
  %72 = vmatprep.subr.bf16.mxu0 0
  %73 = vmatpush1.bf16.msra.mxu0 0
  %74 = vmatprep.subr.bf16.mxu0 0
  %75 = vmatpush1.bf16.msra.mxu0 0
  %76 = vmatprep.subr.bf16.mxu0 0
  %77 = vmatpush1.bf16.msra.mxu0 0
  %78 = vmatprep.subr.bf16.mxu0 0
  %79 = vmatpush1.bf16.msra.mxu0 0
  %80 = vmatprep.subr.bf16.mxu0 0
  %81 = vmatpush1.bf16.msra.mxu0 %v64
  %82 = vmatprep.subr.bf16.mxu0 0
  %83 = vmatpush2.bf16.msra.mxu0 0
  %84 = vmatprep.subr.bf16.mxu0 0
  %85 = vmatpush2.bf16.msra.mxu0 0
  %86 = vmatprep.subr.bf16.mxu0 0
  %87 = vmatpush2.bf16.msra.mxu0 0
  %88 = vmatprep.subr.bf16.mxu0 0
  %89 = vmatpush2.bf16.msra.mxu0 0
  %90 = vmatprep.subr.bf16.mxu0 0
  %91 = vmatpush2.bf16.msra.mxu0 0
  %92 = vmatprep.subr.bf16.mxu0 0
  %93 = vmatpush2.bf16.msra.mxu0 0
  %94 = vmatprep.subr.bf16.mxu0 0
  %95 = vmatpush2.bf16.msra.mxu0 0
  %96 = vmatprep.subr.bf16.mxu0 0
  %97 = vmatpush2.bf16.msra.mxu0 0
  %98 = vmatprep.mubr.bf16.mxu0 0
  %99 = vmatmul.mubr.bf16.gmra.mxu0 %v60
  %v100 = vpop.f32.mrf.mxu0
  %v101 = vadd.f32 0.0, %v100
  %v102 = vpop.f32.mrf.mxu0
  %v103 = vpop.f32.mrf.mxu0
  %v104 = vadd.f32 0.0, %v103
  %v105 = vpop.f32.mrf.mxu0
  %106 = vdwg.mxu0
  %v107 = vpack.c.bf16 %v104, %v101
  %v108 = vld [vmem:[%s3] sm:$0xf]
  %v110 = vsel %vm62, %v108, 0
  %112 = vmatprep.subr.bf16.mxu0 0
  %113 = vmatpush1.bf16.msra.mxu0 0
  %114 = vmatprep.subr.bf16.mxu0 0
  %115 = vmatpush1.bf16.msra.mxu0 0
  %116 = vmatprep.subr.bf16.mxu0 0
  %117 = vmatpush1.bf16.msra.mxu0 0
  %118 = vmatprep.subr.bf16.mxu0 0
  %119 = vmatpush1.bf16.msra.mxu0 0
  %120 = vmatprep.subr.bf16.mxu0 0
  %121 = vmatpush1.bf16.msra.mxu0 0
  %122 = vmatprep.subr.bf16.mxu0 0
  %123 = vmatpush1.bf16.msra.mxu0 0
  %124 = vmatprep.subr.bf16.mxu0 0
  %125 = vmatpush1.bf16.msra.mxu0 0
  %126 = vmatprep.subr.bf16.mxu0 0
  %127 = vmatpush1.bf16.msra.mxu0 %v110
  %128 = vmatprep.subr.bf16.mxu0 0
  %129 = vmatpush2.bf16.msra.mxu0 0
  %130 = vmatprep.subr.bf16.mxu0 0
  %131 = vmatpush2.bf16.msra.mxu0 0
  %132 = vmatprep.subr.bf16.mxu0 0
  %133 = vmatpush2.bf16.msra.mxu0 0
  %134 = vmatprep.subr.bf16.mxu0 0
  %135 = vmatpush2.bf16.msra.mxu0 0
  %136 = vmatprep.subr.bf16.mxu0 0
  %137 = vmatpush2.bf16.msra.mxu0 0
  %138 = vmatprep.subr.bf16.mxu0 0
  %139 = vmatpush2.bf16.msra.mxu0 0
  %140 = vmatprep.subr.bf16.mxu0 0
  %141 = vmatpush2.bf16.msra.mxu0 0
  %142 = vmatprep.subr.bf16.mxu0 0
  %143 = vmatpush2.bf16.msra.mxu0 0
  %144 = vmatprep.mubr.bf16.mxu0 0
  %145 = vmatmul.mubr.bf16.gmra.mxu0 %v60
  %v146 = vpop.f32.mrf.mxu0
  %v147 = vadd.f32 0.0, %v146
  %v148 = vpop.f32.mrf.mxu0
  %v149 = vpop.f32.mrf.mxu0
  %v150 = vadd.f32 0.0, %v149
  %v151 = vpop.f32.mrf.mxu0
  %152 = vdwg.mxu0
  %v153 = vld [vmem:[%s4] sm:$0x1]
  %v155 = vsel %vm58, %v153, 0
  %157 = vmatprep.subr.bf16.mxu0 0
  %158 = vmatpush1.bf16.xpose.msra.mxu0 0
  %159 = vmatprep.subr.bf16.mxu0 0
  %160 = vmatpush1.bf16.xpose.msra.mxu0 0
  %161 = vmatprep.subr.bf16.mxu0 0
  %162 = vmatpush1.bf16.xpose.msra.mxu0 0
  %163 = vmatprep.subr.bf16.mxu0 0
  %164 = vmatpush1.bf16.xpose.msra.mxu0 0
  %165 = vmatprep.subr.bf16.mxu0 0
  %166 = vmatpush1.bf16.xpose.msra.mxu0 0
  %167 = vmatprep.subr.bf16.mxu0 0
  %168 = vmatpush1.bf16.xpose.msra.mxu0 0
  %169 = vmatprep.subr.bf16.mxu0 0
  %170 = vmatpush1.bf16.xpose.msra.mxu0 0
  %171 = vmatprep.subr.bf16.mxu0 0
  %172 = vmatpush1.bf16.xpose.msra.mxu0 %v60
  %173 = vmatprep.subr.bf16.mxu0 0
  %174 = vmatpush2.bf16.xpose.msra.mxu0 0
  %175 = vmatprep.subr.bf16.mxu0 0
  %176 = vmatpush2.bf16.xpose.msra.mxu0 0
  %177 = vmatprep.subr.bf16.mxu0 0
  %178 = vmatpush2.bf16.xpose.msra.mxu0 0
  %179 = vmatprep.subr.bf16.mxu0 0
  %180 = vmatpush2.bf16.xpose.msra.mxu0 0
  %181 = vmatprep.subr.bf16.mxu0 0
  %182 = vmatpush2.bf16.xpose.msra.mxu0 0
  %183 = vmatprep.subr.bf16.mxu0 0
  %184 = vmatpush2.bf16.xpose.msra.mxu0 0
  %185 = vmatprep.subr.bf16.mxu0 0
  %186 = vmatpush2.bf16.xpose.msra.mxu0 0
  %187 = vmatprep.subr.bf16.mxu0 0
  %188 = vmatpush2.bf16.xpose.msra.mxu0 0
  %189 = vmatprep.mubr.bf16.mxu0 0
  %190 = vmatmul.mubr.bf16.gmra.mxu0 %v155
  %v191 = vpop.f32.mrf.mxu0
  %v192 = vadd.f32 0.0, %v191
  %v193 = vpop.f32.mrf.mxu0
  %v194 = vpop.f32.mrf.mxu0
  %v195 = vpop.f32.mrf.mxu0
  %196 = vdwg.mxu0
  %198 = vset.pattern.permute.xlu0 0
  %199 = vperm.xlu0 %198, %v147
  %v200 = vpop.permute.xlu0 %199
  %203 = vset.pattern.permute.xlu0 0
  %204 = vperm.xlu0 %203, %v150
  %v205 = vpop.permute.xlu0 %204
  %v207 = vlaneseq
  %v208 = vshrl.u32 %v207, 7
  %v209 = vsub.s32 0, %v208
  %v210 = vrot.slane %v192, %v209
  %v211 = vadd.f32 %v200, %v210
  %v212 = vadd.f32 %v205, %v210
  %v213 = vmul.f32 %v211, 0.2
  %v214 = vmul.f32 %v212, 0.2
  %v215 = vmax.f32 %v211, %v213
  %v216 = vmax.f32 %v212, %v214
  %v217 = vsel %vm48, %v215, -1e+09
  %v218 = vsel %vm49, %v216, -1e+09
  %vm219 = vcmask 130048
  %v220 = vsel %vm219, %v217, -inf
  %221 = vmax.xlane.f32.xlu0 %v220
  %v222 = vpop.xlane.xlu0 %221
  %v223 = vsel %vm219, %v218, -inf
  %224 = vmax.xlane.f32.xlu0 %v223
  %v225 = vpop.xlane.xlu0 %224
  %v226 = vsub.f32 %v217, %v222
  %v227 = vsub.f32 %v218, %v225
  %v228 = vmul.f32 %v226, 1.442695
  %v229 = vpow.pop %v228
  %v230 = vmul.f32 %v227, 1.442695
  %v231 = vpow.pop %v230
  %v232 = vsel %vm219, %v229, 0.0
  %233 = vadd.xlane.f32.xlu0 %v232
  %v234 = vpop.xlane.xlu0 %233
  %v235 = vsel %vm219, %v231, 0.0
  %236 = vadd.xlane.f32.xlu0 %v235
  %v237 = vpop.xlane.xlu0 %236
  %v238 = vrcp.pop %v234
  %v239 = vrcp.pop %v237
  %v240 = vmul.f32 %v229, %v238
  %v241 = vmul.f32 %v231, %v239
  %v242 = vpack.c.bf16 %v241, %v240
  %v244 = vsel %vm219, %v242, 0
  %246 = vmatprep.subr.bf16.mxu0 0
  %247 = vmatpush1.bf16.msra.mxu0 0
  %248 = vmatprep.subr.bf16.mxu0 0
  %249 = vmatpush1.bf16.msra.mxu0 0
  %250 = vmatprep.subr.bf16.mxu0 0
  %251 = vmatpush1.bf16.msra.mxu0 0
  %252 = vmatprep.subr.bf16.mxu0 0
  %253 = vmatpush1.bf16.msra.mxu0 0
  %254 = vmatprep.subr.bf16.mxu0 0
  %255 = vmatpush1.bf16.msra.mxu0 0
  %256 = vmatprep.subr.bf16.mxu0 0
  %257 = vmatpush1.bf16.msra.mxu0 0
  %258 = vmatprep.subr.bf16.mxu0 0
  %259 = vmatpush1.bf16.msra.mxu0 0
  %260 = vmatprep.subr.bf16.mxu0 0
  %261 = vmatpush1.bf16.msra.mxu0 %v107
  %262 = vmatprep.subr.bf16.mxu0 0
  %263 = vmatpush2.bf16.msra.mxu0 0
  %264 = vmatprep.subr.bf16.mxu0 0
  %265 = vmatpush2.bf16.msra.mxu0 0
  %266 = vmatprep.subr.bf16.mxu0 0
  %267 = vmatpush2.bf16.msra.mxu0 0
  %268 = vmatprep.subr.bf16.mxu0 0
  %269 = vmatpush2.bf16.msra.mxu0 0
  %270 = vmatprep.subr.bf16.mxu0 0
  %271 = vmatpush2.bf16.msra.mxu0 0
  %272 = vmatprep.subr.bf16.mxu0 0
  %273 = vmatpush2.bf16.msra.mxu0 0
  %274 = vmatprep.subr.bf16.mxu0 0
  %275 = vmatpush2.bf16.msra.mxu0 0
  %276 = vmatprep.subr.bf16.mxu0 0
  %277 = vmatpush2.bf16.msra.mxu0 0
  %278 = vmatprep.mubr.bf16.mxu0 0
  %279 = vmatmul.mubr.bf16.gmra.mxu0 %v244
  %v280 = vpop.f32.mrf.mxu0
  %v281 = vadd.f32 0.0, %v280
  %v282 = vpop.f32.mrf.mxu0
  %v283 = vpop.f32.mrf.mxu0
  %v284 = vadd.f32 0.0, %v283
  %v285 = vpop.f32.mrf.mxu0
  %286 = vdwg.mxu0
  %vm287 = vcmp.gt.f32.partialorder %v281, 0.0
  %vm288 = vcmp.gt.f32.partialorder %v284, 0.0
  %v289 = vmin.f32 %v281, 0.0
  %v290 = vmin.f32 %v284, 0.0
  %v291 = vmul.f32 %v289, 1.442695
  %v292 = vpow.pop %v291
  %v293 = vmul.f32 %v290, 1.442695
  %v294 = vpow.pop %v293
  %v295 = vsub.f32 %v292, 1.0
  %v296 = vsub.f32 %v294, 1.0
  %v297 = vsel %vm287, %v281, %v295
  %v298 = vsel %vm288, %v284, %v296
  %v299 = vpack.c.bf16 %v298, %v297
  %v300 = vld [vmem:[%s5] sm:$0xf]
  %v301 = vld [vmem:[%s5 + $0x4] sm:$0xf]
  %v302 = vld [vmem:[%s5 + $0x8] sm:$0xf]
  %v303 = vld [vmem:[%s5 + $0xc] sm:$0xf]
  %v304 = vld [vmem:[%s5 + $0x10] sm:$0xf]
  %v305 = vld [vmem:[%s5 + $0x14] sm:$0xf]
  %v306 = vld [vmem:[%s5 + $0x18] sm:$0xf]
  %v307 = vld [vmem:[%s5 + $0x1c] sm:$0xf]
  %v308 = vld [vmem:[%s5 + $0x20] sm:$0xf]
  %v309 = vld [vmem:[%s5 + $0x24] sm:$0xf]
  %v310 = vld [vmem:[%s5 + $0x28] sm:$0xf]
  %v311 = vld [vmem:[%s5 + $0x2c] sm:$0xf]
  %v312 = vld [vmem:[%s5 + $0x30] sm:$0xf]
  %v313 = vld [vmem:[%s5 + $0x34] sm:$0xf]
  %v314 = vld [vmem:[%s5 + $0x38] sm:$0xf]
  %v315 = vld [vmem:[%s5 + $0x3c] sm:$0xf]
  %v316 = vld [vmem:[%s6] sm:$0x1]
  %v318 = vlaneseq
  %v319 = vshrl.u32 %v318, 7
  %v320 = vsub.s32 0, %v319
  %v321 = vrot.slane %v316, %v320
  %v339 = vunpack.c.l.b16 %v300
  %v340 = vunpack.c.l.b16 %v301
  %v341 = vunpack.c.l.b16 %v302
  %v342 = vunpack.c.l.b16 %v303
  %v343 = vunpack.c.l.b16 %v304
  %v344 = vunpack.c.l.b16 %v305
  %v345 = vunpack.c.l.b16 %v306
  %v346 = vunpack.c.l.b16 %v307
  %v347 = vunpack.c.l.b16 %v308
  %v348 = vunpack.c.l.b16 %v309
  %v349 = vunpack.c.l.b16 %v310
  %v350 = vunpack.c.l.b16 %v311
  %v351 = vunpack.c.l.b16 %v312
  %v352 = vunpack.c.l.b16 %v313
  %v353 = vunpack.c.l.b16 %v314
  %v354 = vunpack.c.l.b16 %v315
  %v355 = vpack.c.b16 %v340, %v339
  %v356 = vpack.c.b16 %v342, %v341
  %v357 = vpack.c.b16 %v344, %v343
  %v358 = vpack.c.b16 %v346, %v345
  %v359 = vpack.c.b16 %v348, %v347
  %v360 = vpack.c.b16 %v350, %v349
  %v361 = vpack.c.b16 %v352, %v351
  %v362 = vpack.c.b16 %v354, %v353
  %371 = vmatprep.subr.bf16.mxu0 0
  %372 = vmatpush1.bf16.msra.mxu0 %v362
  %373 = vmatprep.subr.bf16.mxu0 0
  %374 = vmatpush1.bf16.msra.mxu0 %v361
  %375 = vmatprep.subr.bf16.mxu0 0
  %376 = vmatpush1.bf16.msra.mxu0 %v360
  %377 = vmatprep.subr.bf16.mxu0 0
  %378 = vmatpush1.bf16.msra.mxu0 %v359
  %379 = vmatprep.subr.bf16.mxu0 0
  %380 = vmatpush1.bf16.msra.mxu0 %v358
  %381 = vmatprep.subr.bf16.mxu0 0
  %382 = vmatpush1.bf16.msra.mxu0 %v357
  %383 = vmatprep.subr.bf16.mxu0 0
  %384 = vmatpush1.bf16.msra.mxu0 %v356
  %385 = vmatprep.subr.bf16.mxu0 0
  %386 = vmatpush1.bf16.msra.mxu0 %v355
  %387 = vmatprep.subr.bf16.mxu0 0
  %388 = vmatpush2.bf16.msra.mxu0 0
  %389 = vmatprep.subr.bf16.mxu0 0
  %390 = vmatpush2.bf16.msra.mxu0 0
  %391 = vmatprep.subr.bf16.mxu0 0
  %392 = vmatpush2.bf16.msra.mxu0 0
  %393 = vmatprep.subr.bf16.mxu0 0
  %394 = vmatpush2.bf16.msra.mxu0 0
  %395 = vmatprep.subr.bf16.mxu0 0
  %396 = vmatpush2.bf16.msra.mxu0 0
  %397 = vmatprep.subr.bf16.mxu0 0
  %398 = vmatpush2.bf16.msra.mxu0 0
  %399 = vmatprep.subr.bf16.mxu0 0
  %400 = vmatpush2.bf16.msra.mxu0 0
  %401 = vmatprep.subr.bf16.mxu0 0
  %402 = vmatpush2.bf16.msra.mxu0 0
  %403 = vmatprep.mubr.bf16.mxu0 0
  %404 = vmatmul.mubr.bf16.gmra.mxu0 %v299
  %v405 = vpop.f32.mrf.mxu0
  %v406 = vadd.f32 %v321, %v405
  %v407 = vpop.f32.mrf.mxu0
  %v408 = vpop.f32.mrf.mxu0
  %v409 = vadd.f32 %v321, %v408
  %v410 = vpop.f32.mrf.mxu0
  %411 = vdwg.mxu0
  %vm412 = vcmp.gt.f32.partialorder %v406, 0.0
  %vm413 = vcmp.gt.f32.partialorder %v409, 0.0
  %v414 = vmin.f32 %v406, 0.0
  %v415 = vmin.f32 %v409, 0.0
  %v416 = vmul.f32 %v414, 1.442695
  %v417 = vpow.pop %v416
  %v418 = vmul.f32 %v415, 1.442695
  %v419 = vpow.pop %v418
  %v420 = vsub.f32 %v417, 1.0
  %v421 = vsub.f32 %v419, 1.0
  %v422 = vsel %vm412, %v406, %v420
  %v423 = vsel %vm413, %v409, %v421
  %v424 = vpack.c.bf16 %v423, %v422
  %v425 = vld [vmem:[%s7] sm:$0xf]
  %v426 = vld [vmem:[%s7 + $0x4] sm:$0xf]
  %v427 = vld [vmem:[%s7 + $0x8] sm:$0xf]
  %v428 = vld [vmem:[%s7 + $0xc] sm:$0xf]
  %v429 = vld [vmem:[%s7 + $0x10] sm:$0xf]
  %v430 = vld [vmem:[%s7 + $0x14] sm:$0xf]
  %v431 = vld [vmem:[%s7 + $0x18] sm:$0xf]
  %v432 = vld [vmem:[%s7 + $0x1c] sm:$0xf]
  %v441 = vunpack.c.l.b16 %v425
  %v442 = vunpack.c.l.b16 %v426
  %v443 = vunpack.c.l.b16 %v427
  %v444 = vunpack.c.l.b16 %v428
  %v445 = vunpack.c.l.b16 %v429
  %v446 = vunpack.c.l.b16 %v430
  %v447 = vunpack.c.l.b16 %v431
  %v448 = vunpack.c.l.b16 %v432
  %v449 = vpack.c.b16 %v442, %v441
  %v450 = vpack.c.b16 %v444, %v443
  %v451 = vpack.c.b16 %v446, %v445
  %v452 = vpack.c.b16 %v448, %v447
  %vm457 = vcmask 523264
  %v459 = vsel %vm457, %v424, 0
  %461 = vmatprep.subr.bf16.mxu0 0
  %462 = vmatpush1.bf16.msra.mxu0 0
  %463 = vmatprep.subr.bf16.mxu0 0
  %464 = vmatpush1.bf16.msra.mxu0 0
  %465 = vmatprep.subr.bf16.mxu0 0
  %466 = vmatpush1.bf16.msra.mxu0 0
  %467 = vmatprep.subr.bf16.mxu0 0
  %468 = vmatpush1.bf16.msra.mxu0 0
  %469 = vmatprep.subr.bf16.mxu0 0
  %470 = vmatpush1.bf16.msra.mxu0 %v452
  %471 = vmatprep.subr.bf16.mxu0 0
  %472 = vmatpush1.bf16.msra.mxu0 %v451
  %473 = vmatprep.subr.bf16.mxu0 0
  %474 = vmatpush1.bf16.msra.mxu0 %v450
  %475 = vmatprep.subr.bf16.mxu0 0
  %476 = vmatpush1.bf16.msra.mxu0 %v449
  %477 = vmatprep.subr.bf16.mxu0 0
  %478 = vmatpush2.bf16.msra.mxu0 0
  %479 = vmatprep.subr.bf16.mxu0 0
  %480 = vmatpush2.bf16.msra.mxu0 0
  %481 = vmatprep.subr.bf16.mxu0 0
  %482 = vmatpush2.bf16.msra.mxu0 0
  %483 = vmatprep.subr.bf16.mxu0 0
  %484 = vmatpush2.bf16.msra.mxu0 0
  %485 = vmatprep.subr.bf16.mxu0 0
  %486 = vmatpush2.bf16.msra.mxu0 0
  %487 = vmatprep.subr.bf16.mxu0 0
  %488 = vmatpush2.bf16.msra.mxu0 0
  %489 = vmatprep.subr.bf16.mxu0 0
  %490 = vmatpush2.bf16.msra.mxu0 0
  %491 = vmatprep.subr.bf16.mxu0 0
  %492 = vmatpush2.bf16.msra.mxu0 0
  %493 = vmatprep.mubr.bf16.mxu0 0
  %494 = vmatmul.mubr.bf16.gmra.mxu0 %v459
  %v495 = vpop.f32.mrf.mxu0
  %v496 = vadd.f32 0.0, %v495
  %v497 = vpop.f32.mrf.mxu0
  %v498 = vpop.f32.mrf.mxu0
  %v499 = vadd.f32 0.0, %v498
  %v500 = vpop.f32.mrf.mxu0
  %501 = vdwg.mxu0
  %v502 = vpack.c.bf16 %v499, %v496
  %v503 = vld [vmem:[%s8] sm:$0xf]
  %v504 = vld [vmem:[%s8 + $0x4] sm:$0xf]
  %v505 = vld [vmem:[%s8 + $0x8] sm:$0xf]
  %v506 = vld [vmem:[%s8 + $0xc] sm:$0xf]
  %v507 = vld [vmem:[%s8 + $0x10] sm:$0xf]
  %v508 = vld [vmem:[%s8 + $0x14] sm:$0xf]
  %v509 = vld [vmem:[%s8 + $0x18] sm:$0xf]
  %v510 = vld [vmem:[%s8 + $0x1c] sm:$0xf]
  %v519 = vunpack.c.l.b16 %v503
  %v520 = vunpack.c.l.b16 %v504
  %v521 = vunpack.c.l.b16 %v505
  %v522 = vunpack.c.l.b16 %v506
  %v523 = vunpack.c.l.b16 %v507
  %v524 = vunpack.c.l.b16 %v508
  %v525 = vunpack.c.l.b16 %v509
  %v526 = vunpack.c.l.b16 %v510
  %v527 = vpack.c.b16 %v520, %v519
  %v528 = vpack.c.b16 %v522, %v521
  %v529 = vpack.c.b16 %v524, %v523
  %v530 = vpack.c.b16 %v526, %v525
  %535 = vmatprep.subr.bf16.mxu0 0
  %536 = vmatpush1.bf16.msra.mxu0 0
  %537 = vmatprep.subr.bf16.mxu0 0
  %538 = vmatpush1.bf16.msra.mxu0 0
  %539 = vmatprep.subr.bf16.mxu0 0
  %540 = vmatpush1.bf16.msra.mxu0 0
  %541 = vmatprep.subr.bf16.mxu0 0
  %542 = vmatpush1.bf16.msra.mxu0 0
  %543 = vmatprep.subr.bf16.mxu0 0
  %544 = vmatpush1.bf16.msra.mxu0 %v530
  %545 = vmatprep.subr.bf16.mxu0 0
  %546 = vmatpush1.bf16.msra.mxu0 %v529
  %547 = vmatprep.subr.bf16.mxu0 0
  %548 = vmatpush1.bf16.msra.mxu0 %v528
  %549 = vmatprep.subr.bf16.mxu0 0
  %550 = vmatpush1.bf16.msra.mxu0 %v527
  %551 = vmatprep.subr.bf16.mxu0 0
  %552 = vmatpush2.bf16.msra.mxu0 0
  %553 = vmatprep.subr.bf16.mxu0 0
  %554 = vmatpush2.bf16.msra.mxu0 0
  %555 = vmatprep.subr.bf16.mxu0 0
  %556 = vmatpush2.bf16.msra.mxu0 0
  %557 = vmatprep.subr.bf16.mxu0 0
  %558 = vmatpush2.bf16.msra.mxu0 0
  %559 = vmatprep.subr.bf16.mxu0 0
  %560 = vmatpush2.bf16.msra.mxu0 0
  %561 = vmatprep.subr.bf16.mxu0 0
  %562 = vmatpush2.bf16.msra.mxu0 0
  %563 = vmatprep.subr.bf16.mxu0 0
  %564 = vmatpush2.bf16.msra.mxu0 0
  %565 = vmatprep.subr.bf16.mxu0 0
  %566 = vmatpush2.bf16.msra.mxu0 0
  %567 = vmatprep.mubr.bf16.mxu0 0
  %568 = vmatmul.mubr.bf16.gmra.mxu0 %v459
  %v569 = vpop.f32.mrf.mxu0
  %v570 = vadd.f32 0.0, %v569
  %v571 = vpop.f32.mrf.mxu0
  %v572 = vpop.f32.mrf.mxu0
  %v573 = vadd.f32 0.0, %v572
  %v574 = vpop.f32.mrf.mxu0
  %575 = vdwg.mxu0
  %v576 = vld [vmem:[%s9] sm:$0x1]
  %v578 = vsel %vm457, %v576, 0
  %580 = vmatprep.subr.bf16.mxu0 0
  %581 = vmatpush1.bf16.xpose.msra.mxu0 0
  %582 = vmatprep.subr.bf16.mxu0 0
  %583 = vmatpush1.bf16.xpose.msra.mxu0 0
  %584 = vmatprep.subr.bf16.mxu0 0
  %585 = vmatpush1.bf16.xpose.msra.mxu0 0
  %586 = vmatprep.subr.bf16.mxu0 0
  %587 = vmatpush1.bf16.xpose.msra.mxu0 0
  %588 = vmatprep.subr.bf16.mxu0 0
  %589 = vmatpush1.bf16.xpose.msra.mxu0 0
  %590 = vmatprep.subr.bf16.mxu0 0
  %591 = vmatpush1.bf16.xpose.msra.mxu0 0
  %592 = vmatprep.subr.bf16.mxu0 0
  %593 = vmatpush1.bf16.xpose.msra.mxu0 0
  %594 = vmatprep.subr.bf16.mxu0 0
  %595 = vmatpush1.bf16.xpose.msra.mxu0 %v459
  %596 = vmatprep.subr.bf16.mxu0 0
  %597 = vmatpush2.bf16.xpose.msra.mxu0 0
  %598 = vmatprep.subr.bf16.mxu0 0
  %599 = vmatpush2.bf16.xpose.msra.mxu0 0
  %600 = vmatprep.subr.bf16.mxu0 0
  %601 = vmatpush2.bf16.xpose.msra.mxu0 0
  %602 = vmatprep.subr.bf16.mxu0 0
  %603 = vmatpush2.bf16.xpose.msra.mxu0 0
  %604 = vmatprep.subr.bf16.mxu0 0
  %605 = vmatpush2.bf16.xpose.msra.mxu0 0
  %606 = vmatprep.subr.bf16.mxu0 0
  %607 = vmatpush2.bf16.xpose.msra.mxu0 0
  %608 = vmatprep.subr.bf16.mxu0 0
  %609 = vmatpush2.bf16.xpose.msra.mxu0 0
  %610 = vmatprep.subr.bf16.mxu0 0
  %611 = vmatpush2.bf16.xpose.msra.mxu0 0
  %612 = vmatprep.mubr.bf16.mxu0 0
  %613 = vmatmul.mubr.bf16.gmra.mxu0 %v578
  %v614 = vpop.f32.mrf.mxu0
  %v615 = vadd.f32 0.0, %v614
  %v616 = vpop.f32.mrf.mxu0
  %v617 = vpop.f32.mrf.mxu0
  %v618 = vpop.f32.mrf.mxu0
  %619 = vdwg.mxu0
  %621 = vset.pattern.permute.xlu0 0
  %622 = vperm.xlu0 %621, %v570
  %v623 = vpop.permute.xlu0 %622
  %626 = vset.pattern.permute.xlu0 0
  %627 = vperm.xlu0 %626, %v573
  %v628 = vpop.permute.xlu0 %627
  %v630 = vlaneseq
  %v631 = vshrl.u32 %v630, 7
  %v632 = vsub.s32 0, %v631
  %v633 = vrot.slane %v615, %v632
  %v634 = vadd.f32 %v623, %v633
  %v635 = vadd.f32 %v628, %v633
  %v636 = vmul.f32 %v634, 0.2
  %v637 = vmul.f32 %v635, 0.2
  %v638 = vmax.f32 %v634, %v636
  %v639 = vmax.f32 %v635, %v637
  %v640 = vsel %vm48, %v638, -1e+09
  %v641 = vsel %vm49, %v639, -1e+09
  %v642 = vsel %vm219, %v640, -inf
  %643 = vmax.xlane.f32.xlu0 %v642
  %v644 = vpop.xlane.xlu0 %643
  %v645 = vsel %vm219, %v641, -inf
  %646 = vmax.xlane.f32.xlu0 %v645
  %v647 = vpop.xlane.xlu0 %646
  %v648 = vsub.f32 %v640, %v644
  %v649 = vsub.f32 %v641, %v647
  %v650 = vmul.f32 %v648, 1.442695
  %v651 = vpow.pop %v650
  %v652 = vmul.f32 %v649, 1.442695
  %v653 = vpow.pop %v652
  %v654 = vsel %vm219, %v651, 0.0
  %655 = vadd.xlane.f32.xlu0 %v654
  %v656 = vpop.xlane.xlu0 %655
  %v657 = vsel %vm219, %v653, 0.0
  %658 = vadd.xlane.f32.xlu0 %v657
  %v659 = vpop.xlane.xlu0 %658
  %v660 = vrcp.pop %v656
  %v661 = vrcp.pop %v659
  %v662 = vmul.f32 %v651, %v660
  %v663 = vmul.f32 %v653, %v661
  %v664 = vpack.c.bf16 %v663, %v662
  %v666 = vsel %vm219, %v664, 0
  %668 = vmatprep.subr.bf16.mxu0 0
  %669 = vmatpush1.bf16.msra.mxu0 0
  %670 = vmatprep.subr.bf16.mxu0 0
  %671 = vmatpush1.bf16.msra.mxu0 0
  %672 = vmatprep.subr.bf16.mxu0 0
  %673 = vmatpush1.bf16.msra.mxu0 0
  %674 = vmatprep.subr.bf16.mxu0 0
  %675 = vmatpush1.bf16.msra.mxu0 0
  %676 = vmatprep.subr.bf16.mxu0 0
  %677 = vmatpush1.bf16.msra.mxu0 0
  %678 = vmatprep.subr.bf16.mxu0 0
  %679 = vmatpush1.bf16.msra.mxu0 0
  %680 = vmatprep.subr.bf16.mxu0 0
  %681 = vmatpush1.bf16.msra.mxu0 0
  %682 = vmatprep.subr.bf16.mxu0 0
  %683 = vmatpush1.bf16.msra.mxu0 %v502
  %684 = vmatprep.subr.bf16.mxu0 0
  %685 = vmatpush2.bf16.msra.mxu0 0
  %686 = vmatprep.subr.bf16.mxu0 0
  %687 = vmatpush2.bf16.msra.mxu0 0
  %688 = vmatprep.subr.bf16.mxu0 0
  %689 = vmatpush2.bf16.msra.mxu0 0
  %690 = vmatprep.subr.bf16.mxu0 0
  %691 = vmatpush2.bf16.msra.mxu0 0
  %692 = vmatprep.subr.bf16.mxu0 0
  %693 = vmatpush2.bf16.msra.mxu0 0
  %694 = vmatprep.subr.bf16.mxu0 0
  %695 = vmatpush2.bf16.msra.mxu0 0
  %696 = vmatprep.subr.bf16.mxu0 0
  %697 = vmatpush2.bf16.msra.mxu0 0
  %698 = vmatprep.subr.bf16.mxu0 0
  %699 = vmatpush2.bf16.msra.mxu0 0
  %700 = vmatprep.mubr.bf16.mxu0 0
  %701 = vmatmul.mubr.bf16.gmra.mxu0 %v666
  %v702 = vpop.f32.mrf.mxu0
  %v703 = vadd.f32 0.0, %v702
  %v704 = vpop.f32.mrf.mxu0
  %v705 = vpop.f32.mrf.mxu0
  %v706 = vadd.f32 0.0, %v705
  %v707 = vpop.f32.mrf.mxu0
  %708 = vdwg.mxu0
  %vm709 = vcmp.gt.f32.partialorder %v703, 0.0
  %vm710 = vcmp.gt.f32.partialorder %v706, 0.0
  %v711 = vmin.f32 %v703, 0.0
  %v712 = vmin.f32 %v706, 0.0
  %v713 = vmul.f32 %v711, 1.442695
  %v714 = vpow.pop %v713
  %v715 = vmul.f32 %v712, 1.442695
  %v716 = vpow.pop %v715
  %v717 = vsub.f32 %v714, 1.0
  %v718 = vsub.f32 %v716, 1.0
  %v719 = vsel %vm709, %v703, %v717
  %v720 = vsel %vm710, %v706, %v718
  %v721 = vpack.c.bf16 %v720, %v719
  %v722 = vld [vmem:[%s10] sm:$0xf]
  %v723 = vld [vmem:[%s10 + $0x4] sm:$0xf]
  %v724 = vld [vmem:[%s10 + $0x8] sm:$0xf]
  %v725 = vld [vmem:[%s10 + $0xc] sm:$0xf]
  %v726 = vld [vmem:[%s11] sm:$0x1]
  %v728 = vlaneseq
  %v729 = vshrl.u32 %v728, 7
  %v730 = vsub.s32 0, %v729
  %v731 = vrot.slane %v726, %v730
  %v737 = vunpack.c.l.b16 %v722
  %v738 = vunpack.c.l.b16 %v723
  %v739 = vunpack.c.l.b16 %v724
  %v740 = vunpack.c.l.b16 %v725
  %v741 = vpack.c.b16 %v738, %v737
  %v742 = vpack.c.b16 %v740, %v739
  %vm745 = vcmask 261120
  %v747 = vsel %vm745, %v721, 0
  %749 = vmatprep.subr.bf16.mxu0 0
  %750 = vmatpush1.bf16.msra.mxu0 0
  %751 = vmatprep.subr.bf16.mxu0 0
  %752 = vmatpush1.bf16.msra.mxu0 0
  %753 = vmatprep.subr.bf16.mxu0 0
  %754 = vmatpush1.bf16.msra.mxu0 0
  %755 = vmatprep.subr.bf16.mxu0 0
  %756 = vmatpush1.bf16.msra.mxu0 0
  %757 = vmatprep.subr.bf16.mxu0 0
  %758 = vmatpush1.bf16.msra.mxu0 0
  %759 = vmatprep.subr.bf16.mxu0 0
  %760 = vmatpush1.bf16.msra.mxu0 0
  %761 = vmatprep.subr.bf16.mxu0 0
  %762 = vmatpush1.bf16.msra.mxu0 %v742
  %763 = vmatprep.subr.bf16.mxu0 0
  %764 = vmatpush1.bf16.msra.mxu0 %v741
  %765 = vmatprep.subr.bf16.mxu0 0
  %766 = vmatpush2.bf16.msra.mxu0 0
  %767 = vmatprep.subr.bf16.mxu0 0
  %768 = vmatpush2.bf16.msra.mxu0 0
  %769 = vmatprep.subr.bf16.mxu0 0
  %770 = vmatpush2.bf16.msra.mxu0 0
  %771 = vmatprep.subr.bf16.mxu0 0
  %772 = vmatpush2.bf16.msra.mxu0 0
  %773 = vmatprep.subr.bf16.mxu0 0
  %774 = vmatpush2.bf16.msra.mxu0 0
  %775 = vmatprep.subr.bf16.mxu0 0
  %776 = vmatpush2.bf16.msra.mxu0 0
  %777 = vmatprep.subr.bf16.mxu0 0
  %778 = vmatpush2.bf16.msra.mxu0 0
  %779 = vmatprep.subr.bf16.mxu0 0
  %780 = vmatpush2.bf16.msra.mxu0 0
  %781 = vmatprep.mubr.bf16.mxu0 0
  %782 = vmatmul.mubr.bf16.gmra.mxu0 %v747
  %v783 = vpop.f32.mrf.mxu0
  %v784 = vadd.f32 %v731, %v783
  %v785 = vpop.f32.mrf.mxu0
  %v786 = vpop.f32.mrf.mxu0
  %v787 = vadd.f32 %v731, %v786
  %v788 = vpop.f32.mrf.mxu0
  %789 = vdwg.mxu0
  %vm790 = vcmp.gt.f32.partialorder %v784, 0.0
  %vm791 = vcmp.gt.f32.partialorder %v787, 0.0
  %v792 = vmin.f32 %v784, 0.0
  %v793 = vmin.f32 %v787, 0.0
  %v794 = vmul.f32 %v792, 1.442695
  %v795 = vpow.pop %v794
  %v796 = vmul.f32 %v793, 1.442695
  %v797 = vpow.pop %v796
  %v798 = vsub.f32 %v795, 1.0
  %v799 = vsub.f32 %v797, 1.0
  %v800 = vsel %vm790, %v784, %v798
  %v801 = vsel %vm791, %v787, %v799
  %802 = vst [vmem:[%s12] sm:$0xff] %v800
  %803 = vst [vmem:[%s12 + $0x8] sm:$0xff] %v801
  // Predicated region
  $region50: #{graph_attention_net.1} parent=0 // pred_check
    _
  $region51: #{graph_attention_net.1} parent=0 // pred_check_branch
    %805 = sbr.rel (0) target = $region53
  $region52: #{graph_attention_net.1} parent=0 // pred_region
    _
  $region53: #{graph_attention_net.1} parent=0 // pred_fallthru
    _
  // Predicated region
  $region54: #{graph_attention_net.1} parent=0 // pred_check
    _
  $region55: #{graph_attention_net.1} parent=0 // pred_check_branch
    %807 = sbr.rel (0) target = $region57
  $region56: #{graph_attention_net.1} parent=0 // pred_region
    _
  $region57: #{graph_attention_net.1} parent=0 // pred_fallthru
    _

</llo_original>
